<compile_context>
chip_gen: v7x
topology: tpu7x:2x2x1
jax: 0.10.0
libtpu: 0.0.40
codegen_flags: <defaults>
</compile_context>

<pallas_src>
import functools

import jax
import jax.numpy as jnp
from jax.experimental import pallas as pl
from jax.experimental.pallas import tpu as pltpu


def _round_up(x: int, m: int) -> int:
    return ((x + m - 1) // m) * m


def _round_down(x: int, m: int) -> int:
    return (x // m) * m


def _center_loss_kernel(feat_ref, lab_ref, cent_ref, loss_ref, var_ref,
                        gath_ref, lsum_ref, csum_ref, csumsq_ref,
                        *, total_elems, var_n, var_denom, tc, split_lo):
    """One grid step = (batch row-block i) x (centers chunk c).

    feat_ref  : (TB, Dp)  features (zero-padded rows / columns)
    lab_ref   : (TB, 1)   int32 labels (-1 marks padded rows)
    cent_ref  : (TC, Dp)  centers chunk c (zero-padded rows / columns)
    loss_ref  : (1, 1)    mean squared error (written on the last step)
    var_ref   : (1, 1)    unbiased variance of centers (written on the last step)
    gath_ref  : (TB, Dp)  f32 scratch: gathered centers for this batch block
    lsum_ref  : (1, 1)    f32 running sum of squared diffs
    csum_ref  : (1, 1)    f32 running sum of centers
    csumsq_ref: (1, 1)    f32 running sum of squared centers
    """
    i = pl.program_id(0)
    c = pl.program_id(1)
    ni = pl.num_programs(0)
    nc = pl.num_programs(1)

    @pl.when((i == 0) & (c == 0))
    def _init():
        lsum_ref[...] = jnp.zeros_like(lsum_ref)
        csum_ref[...] = jnp.zeros_like(csum_ref)
        csumsq_ref[...] = jnp.zeros_like(csumsq_ref)

    @pl.when(c == 0)
    def _reset_gather():
        gath_ref[...] = jnp.zeros_like(gath_ref)

    labels = lab_ref[...]                                   # (TB, 1) int32
    cents = cent_ref[...].astype(jnp.float32)               # (TC, Dp)
    tb = gath_ref.shape[0]

    # One-hot for this class chunk; 0/1 is exact in bf16 so the MXU runs native
    # bf16 passes instead of emulated f32. Padded rows (label == -1) and padded
    # classes never match -> zero one-hot rows -> zero contribution.
    cls = jax.lax.broadcasted_iota(jnp.int32, (tb, tc), 1) + c * tc
    onehot = (labels == cls).astype(jnp.bfloat16)            # (TB, TC)

    # Split-bf16 gather (hi + lo): each one-hot row selects exactly one center row
    # and the MXU accumulates in f32, so hi+lo recovers f32 centers to ~2^-18 rel.
    c_hi = cents.astype(jnp.bfloat16)
    gathered = jnp.dot(onehot, c_hi, preferred_element_type=jnp.float32)
    if split_lo:
        c_lo = (cents - c_hi.astype(jnp.float32)).astype(jnp.bfloat16)
        gathered = gathered + jnp.dot(onehot, c_lo,
                                      preferred_element_type=jnp.float32)
    gath_ref[...] += gathered

    # Running centers statistics for .var(); each chunk is counted exactly once
    # (only on the first batch block). Padded zero rows/cols contribute nothing.
    @pl.when(i == 0)
    def _center_stats():
        csum_ref[...] += jnp.sum(cents, keepdims=True)
        csumsq_ref[...] += jnp.sum(cents * cents, keepdims=True)

    # Once all centers chunks for this batch block have been gathered, fold the
    # block's squared error into a scalar (XLU reduce rides a free slot; avoids a
    # (TB, Dp) read-modify-write accumulator -> minimal vst traffic on v5e).
    @pl.when(c == nc - 1)
    def _accumulate_loss():
        diff = feat_ref[...].astype(jnp.float32) - gath_ref[...]
        lsum_ref[...] += jnp.sum(diff * diff, keepdims=True)

    @pl.when((i == ni - 1) & (c == nc - 1))
    def _finalize():
        loss_ref[...] = lsum_ref[...] / jnp.float32(total_elems)
        mean = csum_ref[...] / jnp.float32(var_n)
        var = (csumsq_ref[...] - jnp.float32(var_n) * mean * mean)
        var_ref[...] = jnp.maximum(var / jnp.float32(var_denom), 0.0)


@jax.jit
def center_loss_forward(features, labels, centers):
    """Pallas implementation of CenterLoss.forward.

    features: [B, D] float;  labels: [B] int;  centers: [C, D] float (parameter)
    Returns (loss scalar, stats dict of device scalars).
    """
    B, D = features.shape
    C, Dc = centers.shape
    assert D == Dc, "feat_dim mismatch"

    # Lane-dense last dim. Padded columns are zero in both features and centers,
    # so squared diffs are exactly zero and variance sums are unchanged.
    Dp = _round_up(D, 128)

    # Batch row-block: stream ~2 MiB of features per grid step (amortizes the
    # ~0.35 us per-step overhead), capped for VMEM sanity.
    tb_target = max(8, (2 * 1024 * 1024) // (Dp * 4))
    TB = min(_round_up(B, 8), _round_up(min(tb_target, 2048), 8))
    B_pad = _round_up(B, TB)

    # Centers chunk size: bound the materialized (TB, TC) bf16 one-hot (~2 MiB)
    # and the (TC, Dp) f32 chunk (~4 MiB) so the kernel fits v7x's 64 MiB VMEM
    # even for large C*D.
    C128 = _round_up(C, 128)
    tc_onehot = max(128, _round_down((2 * 1024 * 1024) // (TB * 2), 128))
    tc_chunk = max(128, _round_down((4 * 1024 * 1024) // (Dp * 4), 128))
    TC = min(C128, tc_onehot, tc_chunk)
    C_pad = _round_up(C, TC)
    n_cchunks = C_pad // TC

    feats = features
    if B_pad != B or Dp != D:
        feats = jnp.pad(feats, ((0, B_pad - B), (0, Dp - D)))
    labels_i = labels.astype(jnp.int32)
    if B_pad != B:
        labels_i = jnp.pad(labels_i, (0, B_pad - B), constant_values=-1)
    labels2d = labels_i.reshape(B_pad, 1)
    cents = centers
    if C_pad != C or Dp != D:
        cents = jnp.pad(cents, ((0, C_pad - C), (0, Dp - D)))

    total_elems = B * D                  # real (unpadded) element count for the mean
    var_n = C * D
    var_denom = max(var_n - 1, 1)        # guard degenerate 1-element centers
    split_lo = centers.dtype == jnp.float32   # lo pass only needed for f32 centers

    kernel = functools.partial(
        _center_loss_kernel,
        total_elems=total_elems, var_n=var_n, var_denom=var_denom,
        tc=TC, split_lo=split_lo)

    if n_cchunks == 1:
        # Constant index_map: keep exactly one resident copy (no pointless
        # double buffer for a block that never changes).
        cent_spec = pl.BlockSpec((TC, Dp), lambda i, c: (0, 0),
                                 pipeline_mode=pl.Buffered(1))
    else:
        cent_spec = pl.BlockSpec((TC, Dp), lambda i, c: (c, 0))

    # TODO(synk): on v7x, additionally split the batch axis across the two
    # TensorCores (leading "parallel" grid axis + per-core (2,1) partial sums
    # combined in the wrapper, variance computed on core 0 only).
    loss_out, var_out = pl.pallas_call(
        kernel,
        out_shape=(jax.ShapeDtypeStruct((1, 1), jnp.float32),
                   jax.ShapeDtypeStruct((1, 1), jnp.float32)),
        grid_spec=pltpu.PrefetchScalarGridSpec(
            num_scalar_prefetch=0,
            grid=(B_pad // TB, n_cchunks),            # centers chunk is the inner axis
            in_specs=[
                pl.BlockSpec((TB, Dp), lambda i, c: (i, 0)),   # features block
                pl.BlockSpec((TB, 1), lambda i, c: (i, 0)),    # labels block
                cent_spec,                                     # centers chunk
            ],
            out_specs=(pl.BlockSpec((1, 1), lambda i, c: (0, 0)),   # loss
                       pl.BlockSpec((1, 1), lambda i, c: (0, 0))),  # variance
            scratch_shapes=[
                pltpu.VMEM((TB, Dp), jnp.float32),   # gathered centers (per batch block)
                pltpu.VMEM((1, 1), jnp.float32),     # running squared-error sum
                pltpu.VMEM((1, 1), jnp.float32),     # running centers sum
                pltpu.VMEM((1, 1), jnp.float32),     # running centers sum of squares
            ],
        ),
        compiler_params=pltpu.CompilerParams(
            dimension_semantics=("arbitrary", "arbitrary"),
            vmem_limit_bytes=64 * 1024 * 1024),
    )(feats, labels2d, cents)

    loss = loss_out[0, 0]
    # Device scalars (jit-traceable); callers can .item() outside jit if needed.
    stats = {"center_loss": loss, "center_variance": var_out[0, 0]}
    return loss, stats


if __name__ == "__main__":
    num_classes, feat_dim, batch = 16, 32, 8
    lambda_c = 0.1  # noqa: F841  (unused in forward, matches the PyTorch module)

    key = jax.random.PRNGKey(0)
    k_cent, k_feat, k_lab = jax.random.split(key, 3)
    centers = jax.random.normal(k_cent, (num_classes, feat_dim), dtype=jnp.float32)
    features = jax.random.normal(k_feat, (batch, feat_dim), dtype=jnp.float32)
    labels = jax.random.randint(k_lab, (batch,), 0, num_classes, dtype=jnp.int32)

    loss, stats = center_loss_forward(features, labels, centers)
    jax.block_until_ready(loss)

    ref_loss = jnp.mean((features - centers[labels]) ** 2)
    ref_var = jnp.var(centers, ddof=1)
    assert jnp.allclose(loss, ref_loss, rtol=1e-4, atol=1e-5), (loss, ref_loss)
    assert jnp.allclose(stats["center_variance"], ref_var, rtol=1e-4, atol=1e-4)

    # Second check: exercises D padding (96->128), B padding, C padding, multiple
    # batch row-blocks and multiple centers chunks (the v7x-friendly tiled path).
    k2 = jax.random.PRNGKey(1)
    k_c2, k_f2, k_l2 = jax.random.split(k2, 3)
    C2, D2, B2 = 3000, 96, 4101
    centers2 = jax.random.normal(k_c2, (C2, D2), dtype=jnp.float32)
    features2 = jax.random.normal(k_f2, (B2, D2), dtype=jnp.float32)
    labels2 = jax.random.randint(k_l2, (B2,), 0, C2, dtype=jnp.int32)
    loss2, stats2 = center_loss_forward(features2, labels2, centers2)
    jax.block_until_ready(loss2)
    ref_loss2 = jnp.mean((features2 - centers2[labels2]) ** 2)
    ref_var2 = jnp.var(centers2, ddof=1)
    assert jnp.allclose(loss2, ref_loss2, rtol=1e-4, atol=1e-5), (loss2, ref_loss2)
    assert jnp.allclose(stats2["center_variance"], ref_var2, rtol=1e-4, atol=1e-4)

    print("KERNEL_OK")
</pallas_src>

<mosaic_0001>
module attributes {stable_mosaic.version = 11 : i64} {
  func.func @_center_loss_kernel(%arg0: i32, %arg1: i32, %arg2: memref<8x128xf32, #tpu.memory_space<vmem>>, %arg3: memref<8x1xi32, #tpu.memory_space<vmem>>, %arg4: memref<128x128xf32, #tpu.memory_space<vmem>>, %arg5: memref<1x1xf32, #tpu.memory_space<vmem>>, %arg6: memref<1x1xf32, #tpu.memory_space<vmem>>, %arg7: memref<8x128xf32, #tpu.memory_space<vmem>>, %arg8: memref<1x1xf32, #tpu.memory_space<vmem>>, %arg9: memref<1x1xf32, #tpu.memory_space<vmem>>, %arg10: memref<1x1xf32, #tpu.memory_space<vmem>>) attributes {dimension_semantics = [#tpu.dimension_semantics<arbitrary>, #tpu.dimension_semantics<arbitrary>], iteration_bounds = array<i64: 1, 1>, scalar_prefetch = 0 : i64, scratch_operands = 4 : i64, tpu.core_type = #tpu.core_type<tc>, window_params = [{transform_indices = @transform_0, window_bounds = array<i64: 8, 128>}, {transform_indices = @transform_1, window_bounds = array<i64: 8, 1>}, {pipeline_mode = #tpu.pipeline_mode<synchronous>, transform_indices = @transform_2, window_bounds = array<i64: 128, 128>}, {pipeline_mode = #tpu.pipeline_mode<synchronous>, transform_indices = @transform_3, window_bounds = array<i64: 1, 1>}, {pipeline_mode = #tpu.pipeline_mode<synchronous>, transform_indices = @transform_4, window_bounds = array<i64: 1, 1>}]} {
    %c0_i32 = arith.constant 0 : i32
    %0 = arith.cmpi eq, %arg0, %c0_i32 : i32
    %c0_i32_0 = arith.constant 0 : i32
    %1 = arith.cmpi eq, %arg1, %c0_i32_0 : i32
    %2 = arith.andi %0, %1 : i1
    %3 = arith.extui %2 : i1 to i32
    %c0_i32_1 = arith.constant 0 : i32
    %4 = arith.cmpi ne, %3, %c0_i32_1 : i32
    scf.if %4 {
      %cst_19 = arith.constant 0.000000e+00 : f32
      %40 = vector.broadcast %cst_19 : f32 to vector<1x1xf32>
      %c0_20 = arith.constant 0 : index
      %c0_21 = arith.constant 0 : index
      %41 = vector.load %arg8[%c0_20, %c0_21] : memref<1x1xf32, #tpu.memory_space<vmem>>, vector<1x1xf32>
      tpu.vector_store %arg8[%c0_20, %c0_21], %40 {strides = array<i32>} : memref<1x1xf32, #tpu.memory_space<vmem>>, vector<1x1xf32>,
      %cst_22 = arith.constant 0.000000e+00 : f32
      %42 = vector.broadcast %cst_22 : f32 to vector<1x1xf32>
      %c0_23 = arith.constant 0 : index
      %c0_24 = arith.constant 0 : index
      %43 = vector.load %arg9[%c0_23, %c0_24] : memref<1x1xf32, #tpu.memory_space<vmem>>, vector<1x1xf32>
      tpu.vector_store %arg9[%c0_23, %c0_24], %42 {strides = array<i32>} : memref<1x1xf32, #tpu.memory_space<vmem>>, vector<1x1xf32>,
      %cst_25 = arith.constant 0.000000e+00 : f32
      %44 = vector.broadcast %cst_25 : f32 to vector<1x1xf32>
      %c0_26 = arith.constant 0 : index
      %c0_27 = arith.constant 0 : index
      %45 = vector.load %arg10[%c0_26, %c0_27] : memref<1x1xf32, #tpu.memory_space<vmem>>, vector<1x1xf32>
      tpu.vector_store %arg10[%c0_26, %c0_27], %44 {strides = array<i32>} : memref<1x1xf32, #tpu.memory_space<vmem>>, vector<1x1xf32>,
    } else {
    }
    %c0_i32_2 = arith.constant 0 : i32
    %5 = arith.cmpi eq, %arg1, %c0_i32_2 : i32
    %6 = arith.extui %5 : i1 to i32
    %c0_i32_3 = arith.constant 0 : i32
    %7 = arith.cmpi ne, %6, %c0_i32_3 : i32
    scf.if %7 {
      %cst_19 = arith.constant 0.000000e+00 : f32
      %40 = vector.broadcast %cst_19 : f32 to vector<8x128xf32>
      %c0_20 = arith.constant 0 : index
      %c0_21 = arith.constant 0 : index
      %41 = vector.load %arg7[%c0_20, %c0_21] : memref<8x128xf32, #tpu.memory_space<vmem>>, vector<8x128xf32>
      tpu.vector_store %arg7[%c0_20, %c0_21], %40 {strides = array<i32>} : memref<8x128xf32, #tpu.memory_space<vmem>>, vector<8x128xf32>,
    } else {
    }
    %c0 = arith.constant 0 : index
    %c0_4 = arith.constant 0 : index
    %8 = vector.load %arg3[%c0, %c0_4] : memref<8x1xi32, #tpu.memory_space<vmem>>, vector<8x1xi32>
    %c0_5 = arith.constant 0 : index
    %c0_6 = arith.constant 0 : index
    %9 = vector.load %arg4[%c0_5, %c0_6] : memref<128x128xf32, #tpu.memory_space<vmem>>, vector<128x128xf32>
    %10 = tpu.iota {dimensions = array<i32: 1>} : vector<8x128xi32>
    %c128_i32 = arith.constant 128 : i32
    %11 = arith.muli %arg1, %c128_i32 : i32
    %12 = vector.broadcast %11 : i32 to vector<8x128xi32>
    %13 = arith.addi %10, %12 : vector<8x128xi32>
    %14 = vector.broadcast %8 : vector<8x1xi32> to vector<8x128xi32>
    %15 = arith.cmpi eq, %14, %13 : vector<8x128xi32>
    %16 = arith.extui %15 : vector<8x128xi1> to vector<8x128xi32>
    %17 = arith.sitofp %16 : vector<8x128xi32> to vector<8x128xf32>
    %18 = arith.truncf %17 : vector<8x128xf32> to vector<8x128xbf16>
    %19 = arith.truncf %9 : vector<128x128xf32> to vector<128x128xbf16>
    %cst = arith.constant dense<0.000000e+00> : vector<8x128xf32>
    %20 = tpu.matmul %18, %19, %cst {dimension_numbers = #tpu.dot_dimension_numbers<[1], [0], [0], [1], [0, 0, 1, 1], [], []>} : vector<8x128xbf16>, vector<128x128xbf16>, vector<8x128xf32> -> vector<8x128xf32>
    %21 = arith.extf %19 : vector<128x128xbf16> to vector<128x128xf32>
    %22 = arith.subf %9, %21 : vector<128x128xf32>
    %23 = arith.truncf %22 : vector<128x128xf32> to vector<128x128xbf16>
    %cst_7 = arith.constant dense<0.000000e+00> : vector<8x128xf32>
    %24 = tpu.matmul %18, %23, %cst_7 {dimension_numbers = #tpu.dot_dimension_numbers<[1], [0], [0], [1], [0, 0, 1, 1], [], []>} : vector<8x128xbf16>, vector<128x128xbf16>, vector<8x128xf32> -> vector<8x128xf32>
    %25 = arith.addf %20, %24 : vector<8x128xf32>
    %c0_8 = arith.constant 0 : index
    %c0_9 = arith.constant 0 : index
    %26 = vector.load %arg7[%c0_8, %c0_9] : memref<8x128xf32, #tpu.memory_space<vmem>>, vector<8x128xf32>
    %27 = arith.addf %26, %25 : vector<8x128xf32>
    %c0_10 = arith.constant 0 : index
    %c0_11 = arith.constant 0 : index
    %28 = vector.load %arg7[%c0_10, %c0_11] : memref<8x128xf32, #tpu.memory_space<vmem>>, vector<8x128xf32>
    tpu.vector_store %arg7[%c0_10, %c0_11], %27 {strides = array<i32>} : memref<8x128xf32, #tpu.memory_space<vmem>>, vector<8x128xf32>,
    %c0_i32_12 = arith.constant 0 : i32
    %29 = arith.cmpi eq, %arg0, %c0_i32_12 : i32
    %30 = arith.extui %29 : i1 to i32
    %c0_i32_13 = arith.constant 0 : i32
    %31 = arith.cmpi ne, %30, %c0_i32_13 : i32
    scf.if %31 {
      %c0_19 = arith.constant 0 : index
      %c0_20 = arith.constant 0 : index
      %40 = vector.load %arg9[%c0_19, %c0_20] : memref<1x1xf32, #tpu.memory_space<vmem>>, vector<1x1xf32>
      %41 = vector.shape_cast %9 : vector<128x128xf32> to vector<1x128x128xf32>
      %cst_21 = arith.constant dense<0.000000e+00> : vector<1xf32>
      %42 = vector.multi_reduction <add>, %41, %cst_21 [1, 2] : vector<1x128x128xf32> to vector<1xf32>
      %43 = vector.shape_cast %42 : vector<1xf32> to vector<1x1x1xf32>
      %44 = vector.extract %43[0, 0, 0] : f32 from vector<1x1x1xf32>
      %45 = vector.broadcast %44 : f32 to vector<1x1xf32>
      %46 = arith.addf %40, %45 : vector<1x1xf32>
      %c0_22 = arith.constant 0 : index
      %c0_23 = arith.constant 0 : index
      %47 = vector.load %arg9[%c0_22, %c0_23] : memref<1x1xf32, #tpu.memory_space<vmem>>, vector<1x1xf32>
      tpu.vector_store %arg9[%c0_22, %c0_23], %46 {strides = array<i32>} : memref<1x1xf32, #tpu.memory_space<vmem>>, vector<1x1xf32>,
      %c0_24 = arith.constant 0 : index
      %c0_25 = arith.constant 0 : index
      %48 = vector.load %arg10[%c0_24, %c0_25] : memref<1x1xf32, #tpu.memory_space<vmem>>, vector<1x1xf32>
      %49 = arith.mulf %9, %9 : vector<128x128xf32>
      %50 = vector.shape_cast %49 : vector<128x128xf32> to vector<1x128x128xf32>
      %cst_26 = arith.constant dense<0.000000e+00> : vector<1xf32>
      %51 = vector.multi_reduction <add>, %50, %cst_26 [1, 2] : vector<1x128x128xf32> to vector<1xf32>
      %52 = vector.shape_cast %51 : vector<1xf32> to vector<1x1x1xf32>
      %53 = vector.extract %52[0, 0, 0] : f32 from vector<1x1x1xf32>
      %54 = vector.broadcast %53 : f32 to vector<1x1xf32>
      %55 = arith.addf %48, %54 : vector<1x1xf32>
      %c0_27 = arith.constant 0 : index
      %c0_28 = arith.constant 0 : index
      %56 = vector.load %arg10[%c0_27, %c0_28] : memref<1x1xf32, #tpu.memory_space<vmem>>, vector<1x1xf32>
      tpu.vector_store %arg10[%c0_27, %c0_28], %55 {strides = array<i32>} : memref<1x1xf32, #tpu.memory_space<vmem>>, vector<1x1xf32>,
    } else {
    }
    %c0_i32_14 = arith.constant 0 : i32
    %32 = arith.cmpi eq, %arg1, %c0_i32_14 : i32
    %33 = arith.extui %32 : i1 to i32
    %c0_i32_15 = arith.constant 0 : i32
    %34 = arith.cmpi ne, %33, %c0_i32_15 : i32
    scf.if %34 {
      %c0_19 = arith.constant 0 : index
      %c0_20 = arith.constant 0 : index
      %40 = vector.load %arg2[%c0_19, %c0_20] : memref<8x128xf32, #tpu.memory_space<vmem>>, vector<8x128xf32>
      %c0_21 = arith.constant 0 : index
      %c0_22 = arith.constant 0 : index
      %41 = vector.load %arg7[%c0_21, %c0_22] : memref<8x128xf32, #tpu.memory_space<vmem>>, vector<8x128xf32>
      %42 = arith.subf %40, %41 : vector<8x128xf32>
      %c0_23 = arith.constant 0 : index
      %c0_24 = arith.constant 0 : index
      %43 = vector.load %arg8[%c0_23, %c0_24] : memref<1x1xf32, #tpu.memory_space<vmem>>, vector<1x1xf32>
      %44 = arith.mulf %42, %42 : vector<8x128xf32>
      %45 = vector.shape_cast %44 : vector<8x128xf32> to vector<1x8x128xf32>
      %cst_25 = arith.constant dense<0.000000e+00> : vector<1xf32>
      %46 = vector.multi_reduction <add>, %45, %cst_25 [1, 2] : vector<1x8x128xf32> to vector<1xf32>
      %47 = vector.shape_cast %46 : vector<1xf32> to vector<1x1x1xf32>
      %48 = vector.extract %47[0, 0, 0] : f32 from vector<1x1x1xf32>
      %49 = vector.broadcast %48 : f32 to vector<1x1xf32>
      %50 = arith.addf %43, %49 : vector<1x1xf32>
      %c0_26 = arith.constant 0 : index
      %c0_27 = arith.constant 0 : index
      %51 = vector.load %arg8[%c0_26, %c0_27] : memref<1x1xf32, #tpu.memory_space<vmem>>, vector<1x1xf32>
      tpu.vector_store %arg8[%c0_26, %c0_27], %50 {strides = array<i32>} : memref<1x1xf32, #tpu.memory_space<vmem>>, vector<1x1xf32>,
    } else {
    }
    %c0_i32_16 = arith.constant 0 : i32
    %35 = arith.cmpi eq, %arg0, %c0_i32_16 : i32
    %c0_i32_17 = arith.constant 0 : i32
    %36 = arith.cmpi eq, %arg1, %c0_i32_17 : i32
    %37 = arith.andi %35, %36 : i1
    %38 = arith.extui %37 : i1 to i32
    %c0_i32_18 = arith.constant 0 : i32
    %39 = arith.cmpi ne, %38, %c0_i32_18 : i32
    scf.if %39 {
      %c0_19 = arith.constant 0 : index
      %c0_20 = arith.constant 0 : index
      %40 = vector.load %arg8[%c0_19, %c0_20] : memref<1x1xf32, #tpu.memory_space<vmem>>, vector<1x1xf32>
      %cst_21 = arith.constant 2.560000e+02 : f32
      %41 = vector.broadcast %cst_21 : f32 to vector<1x1xf32>
      %42 = arith.divf %40, %41 : vector<1x1xf32>
      %c0_22 = arith.constant 0 : index
      %c0_23 = arith.constant 0 : index
      %43 = vector.load %arg5[%c0_22, %c0_23] : memref<1x1xf32, #tpu.memory_space<vmem>>, vector<1x1xf32>
      tpu.vector_store %arg5[%c0_22, %c0_23], %42 {strides = array<i32>} : memref<1x1xf32, #tpu.memory_space<vmem>>, vector<1x1xf32>,
      %c0_24 = arith.constant 0 : index
      %c0_25 = arith.constant 0 : index
      %44 = vector.load %arg9[%c0_24, %c0_25] : memref<1x1xf32, #tpu.memory_space<vmem>>, vector<1x1xf32>
      %cst_26 = arith.constant 5.120000e+02 : f32
      %45 = vector.broadcast %cst_26 : f32 to vector<1x1xf32>
      %46 = arith.divf %44, %45 : vector<1x1xf32>
      %c0_27 = arith.constant 0 : index
      %c0_28 = arith.constant 0 : index
      %47 = vector.load %arg10[%c0_27, %c0_28] : memref<1x1xf32, #tpu.memory_space<vmem>>, vector<1x1xf32>
      %cst_29 = arith.constant 5.120000e+02 : f32
      %48 = vector.broadcast %cst_29 : f32 to vector<1x1xf32>
      %49 = arith.mulf %48, %46 : vector<1x1xf32>
      %50 = arith.mulf %49, %46 : vector<1x1xf32>
      %51 = arith.subf %47, %50 : vector<1x1xf32>
      %cst_30 = arith.constant 5.110000e+02 : f32
      %52 = vector.broadcast %cst_30 : f32 to vector<1x1xf32>
      %53 = arith.divf %51, %52 : vector<1x1xf32>
      %cst_31 = arith.constant 0.000000e+00 : f32
      %54 = vector.broadcast %cst_31 : f32 to vector<1x1xf32>
      %55 = arith.maximumf %53, %54 : vector<1x1xf32>
      %c0_32 = arith.constant 0 : index
      %c0_33 = arith.constant 0 : index
      %56 = vector.load %arg6[%c0_32, %c0_33] : memref<1x1xf32, #tpu.memory_space<vmem>>, vector<1x1xf32>
      tpu.vector_store %arg6[%c0_32, %c0_33], %55 {strides = array<i32>} : memref<1x1xf32, #tpu.memory_space<vmem>>, vector<1x1xf32>,
    } else {
    }
    return
  }
  func.func @transform_0(%arg0: i32, %arg1: i32) -> (i32, i32) {
    %c0_i32 = arith.constant 0 : i32
    %c0_i32_0 = arith.constant 0 : i32
    return %arg0, %c0_i32 : i32, i32
  }
  func.func @transform_1(%arg0: i32, %arg1: i32) -> (i32, i32) {
    %c0_i32 = arith.constant 0 : i32
    %c0_i32_0 = arith.constant 0 : i32
    return %arg0, %c0_i32 : i32, i32
  }
  func.func @transform_2(%arg0: i32, %arg1: i32) -> (i32, i32) {
    %c0_i32 = arith.constant 0 : i32
    %c0_i32_0 = arith.constant 0 : i32
    %c0_i32_1 = arith.constant 0 : i32
    return %c0_i32, %c0_i32_0 : i32, i32
  }
  func.func @transform_3(%arg0: i32, %arg1: i32) -> (i32, i32) {
    %c0_i32 = arith.constant 0 : i32
    %c0_i32_0 = arith.constant 0 : i32
    %c0_i32_1 = arith.constant 0 : i32
    return %c0_i32, %c0_i32_0 : i32, i32
  }
  func.func @transform_4(%arg0: i32, %arg1: i32) -> (i32, i32) {
    %c0_i32 = arith.constant 0 : i32
    %c0_i32_0 = arith.constant 0 : i32
    %c0_i32_1 = arith.constant 0 : i32
    return %c0_i32, %c0_i32_0 : i32, i32
  }
}

</mosaic_0001>

<llo_original>
// kernel: center_loss_forward.1
$region0: #{center_loss_forward.1}
  #allocation0 [shape = 'u32[]', space=smem, size = 0x4, offset = 0x4, fixed_abs, tag = 'smem constant byte address 0x4 - core index']
  #allocation1 [shape = 'u32[144,128]{1,0:T(1,128)}', space=vmem, size = 0x12000, scoped, tag = 'internal scratch']
  #allocation2 [shape = 'f32[8,128]{1,0:T(8,128)}', space=vmem, size = 0x1000, scoped, tag = 'scratch operand']
  #allocation3 [shape = 'f32[1,1]{1,0:T(1,128)}', space=vmem, size = 0x200, scoped, tag = 'scratch operand']
  #allocation4 [shape = 'f32[1,1]{1,0:T(1,128)}', space=vmem, size = 0x200, scoped, tag = 'scratch operand']
  #allocation5 [shape = 'f32[1,1]{1,0:T(1,128)}', space=vmem, size = 0x200, scoped, tag = 'scratch operand']
  %s0 = inlined_call_operand.hbm [shape: f32[8,128], index: 0, kind: input, shape index: {}]
  %s1 = inlined_call_operand.hbm [shape: s32[8,1], index: 1, kind: input, shape index: {}]
  %s2 = inlined_call_operand.hbm [shape: f32[128,128], index: 2, kind: input, shape index: {}]
  %s3 = inlined_call_operand.hbm [shape: f32[1,1], index: 3, kind: output, shape index: {0}]
  %s4 = inlined_call_operand.hbm [shape: f32[1,1], index: 4, kind: output, shape index: {1}]
  %5 = xla_tuple %s3, %s4
  %s6 = sld [smem:[#allocation0]]
  $region62: #{center_loss_forward.1} parent=0
    _
  %s8 = ssub.s32 1, %s6
  %s9 = scalar_select 0, %s8, %s6
  $region1: #{center_loss_forward.1} parent=0
    #allocation6 [shape = 'u8[4096]{0}', space=vmem, size = 0x1000, scoped, tag = 'input window, operand 0, single buffered']
    #allocation7 [shape = 's32[1]{0}', space=sflag, size = 0x4, scoped, tag = 'scoped memory for center_loss_forward.1']
    #allocation8 [shape = 's32[1]{0}', space=sflag, size = 0x4, scoped, tag = 'scoped memory for center_loss_forward.1']
    #allocation9 [shape = 'u8[4096]{0}', space=vmem, size = 0x1000, scoped, tag = 'input window, operand 1, single buffered']
    #allocation10 [shape = 's32[1]{0}', space=sflag, size = 0x4, scoped, tag = 'scoped memory for center_loss_forward.1']
    #allocation11 [shape = 'u8[65536]{0}', space=vmem, size = 0x10000, scoped, tag = 'input window, operand 2, single buffered']
    #allocation12 [shape = 'u8[512]{0}', space=vmem, size = 0x400, scoped, tag = 'output window, operand 0, single buffered']
    #allocation13 [shape = 'u8[512]{0}', space=vmem, size = 0x400, scoped, tag = 'output window, operand 1, single buffered']
    #allocation14 [shape = 's32[1]{0}', space=sflag, size = 0x4, scoped, tag = 'scoped memory for center_loss_forward.1']
    %10 = vsyncpa [#allocation7], 0
    %11 = vsyncpa [#allocation10], 0
    %12 = vsyncpa [#allocation8], 0
    %13 = vsyncpa [#allocation14], 0
    // Predicated region
    $region2: #{center_loss_forward.1} parent=1 // pred_check
      _
    $region3: #{center_loss_forward.1} parent=1 // pred_check_branch
      %15 = sbr.rel (0) target = $region5
    $region4: #{center_loss_forward.1} parent=1 // pred_region
      %s17 = ssub.s32 128, 128
      %18 = vsyncadd [#allocation7], %s17
      %s20 = sshll.u32 [#allocation6], 4
      %s21 = int_to_ptr.vmem [resolvable:$true] %s20
      %23 = dma.hbm_to_vmem [thread:$0]  %s0, 128, %s21, [#allocation7]
    $region5: #{center_loss_forward.1} parent=1 // pred_fallthru
      _
    // Predicated region
    $region6: #{center_loss_forward.1} parent=1 // pred_check
      _
    $region7: #{center_loss_forward.1} parent=1 // pred_check_branch
      %25 = sbr.rel (0) target = $region9
    $region8: #{center_loss_forward.1} parent=1 // pred_region
      %s27 = ssub.s32 128, 128
      %28 = vsyncadd [#allocation10], %s27
      %s30 = sshll.u32 [#allocation9], 4
      %s31 = int_to_ptr.vmem [resolvable:$true] %s30
      %33 = dma.hbm_to_vmem [thread:$0]  %s1, 128, %s31, [#allocation10]
    $region9: #{center_loss_forward.1} parent=1 // pred_fallthru
      _
    // Predicated region
    $region10: #{center_loss_forward.1} parent=1 // pred_check
      _
    $region11: #{center_loss_forward.1} parent=1 // pred_check_branch
      %35 = sbr.rel (0) target = $region13
    $region12: #{center_loss_forward.1} parent=1 // pred_region
      %s37 = ssub.s32 2048, 2048
      %38 = vsyncadd [#allocation10], %s37
      %s39 = sshll.u32 [#allocation11], 4
      %s40 = int_to_ptr.vmem [resolvable:$true] %s39
      %45 = dma.hbm_to_vmem [thread:$0]  %s2, 2048, %s40, [#allocation10], 128, 128, 8
    $region13: #{center_loss_forward.1} parent=1 // pred_fallthru
      _
    // Predicated region
    $region14: #{center_loss_forward.1} parent=1 // pred_check
      _
    $region15: #{center_loss_forward.1} parent=1 // pred_check_branch
      %47 = sbr.rel (0) target = $region17
    $region16: #{center_loss_forward.1} parent=1 // pred_region
      %48 = dma.done [#allocation7], 128
    $region17: #{center_loss_forward.1} parent=1 // pred_fallthru
      _
    // Predicated region
    $region18: #{center_loss_forward.1} parent=1 // pred_check
      _
    $region19: #{center_loss_forward.1} parent=1 // pred_check_branch
      %50 = sbr.rel (0) target = $region21
    $region20: #{center_loss_forward.1} parent=1 // pred_region
      %51 = dma.done [#allocation10], 128
    $region21: #{center_loss_forward.1} parent=1 // pred_fallthru
      _
    // Predicated region
    $region22: #{center_loss_forward.1} parent=1 // pred_check
      _
    $region23: #{center_loss_forward.1} parent=1 // pred_check_branch
      %53 = sbr.rel (0) target = $region25
    $region24: #{center_loss_forward.1} parent=1 // pred_region
      %54 = dma.done [#allocation10], 2048
    $region25: #{center_loss_forward.1} parent=1 // pred_fallthru
      _
    %p56 = scmp.eq.s32.totalorder 0, 0
    %p57 = scmp.eq.s32.totalorder 0, 0
    %p58 = pnand %p56, %p57
    %p59 = pneg %p58
    // Predicated region
    $region26: #{center_loss_forward.1} parent=1 // pred_check
      _
    $region27: #{center_loss_forward.1} parent=1 // pred_check_branch
      %61 = sbr.rel (%p58) target = $region29
    $region28: #{center_loss_forward.1} parent=1 // pred_region
      %vm62 = vcmask 0
      %63 = vst.msk [vmem:[#allocation3] sm:$0x1] %vm62, 0.0
      %64 = vst.msk [vmem:[#allocation4] sm:$0x1] %vm62, 0.0
      %65 = vst.msk [vmem:[#allocation5] sm:$0x1] %vm62, 0.0
    $region29: #{center_loss_forward.1} parent=1 // pred_fallthru
      _
    // Predicated region
    $region30: #{center_loss_forward.1} parent=1 // pred_check
      %p66 = pneg %p57
    $region31: #{center_loss_forward.1} parent=1 // pred_check_branch
      %68 = sbr.rel (%p66) target = $region33
    $region32: #{center_loss_forward.1} parent=1 // pred_region
      %69 = vst [vmem:[#allocation2] sm:$0xff] 0.0
    $region33: #{center_loss_forward.1} parent=1 // pred_fallthru
      _
    %v70 = vld [vmem:[#allocation9] sm:$0xff]
    %v71 = vld [vmem:[#allocation11] sm:$0xff]
    %v72 = vld [vmem:[#allocation11 + $0x8] sm:$0xff]
    %v73 = vld [vmem:[#allocation11 + $0x10] sm:$0xff]
    %v74 = vld [vmem:[#allocation11 + $0x18] sm:$0xff]
    %v75 = vld [vmem:[#allocation11 + $0x20] sm:$0xff]
    %v76 = vld [vmem:[#allocation11 + $0x28] sm:$0xff]
    %v77 = vld [vmem:[#allocation11 + $0x30] sm:$0xff]
    %v78 = vld [vmem:[#allocation11 + $0x38] sm:$0xff]
    %v79 = vld [vmem:[#allocation11 + $0x40] sm:$0xff]
    %v80 = vld [vmem:[#allocation11 + $0x48] sm:$0xff]
    %v81 = vld [vmem:[#allocation11 + $0x50] sm:$0xff]
    %v82 = vld [vmem:[#allocation11 + $0x58] sm:$0xff]
    %v83 = vld [vmem:[#allocation11 + $0x60] sm:$0xff]
    %v84 = vld [vmem:[#allocation11 + $0x68] sm:$0xff]
    %v85 = vld [vmem:[#allocation11 + $0x70] sm:$0xff]
    %v86 = vld [vmem:[#allocation11 + $0x78] sm:$0xff]
    %v87 = vlaneseq
    %v88 = vand.u32 %v87, 127
    %s89 = smul.u32 0, 128
    %v90 = vstv %s89
    %v91 = vadd.s32 %v88, %v90
    %92 = vset.pattern.permute.xlu0 0
    %93 = vperm.xlu0 %92, %v70
    %v94 = vpop.permute.xlu0 %93
    %vm95 = vcmp.eq.s32.totalorder %v94, %v91
    %v96 = vsel %vm95, 1, 0
    %v97 = vcvt.s32.f32 %v96
    %v98 = vpack.c.bf16 %v97, %v97
    %v99 = vpack.c.bf16 %v72, %v71
    %v100 = vpack.c.bf16 %v74, %v73
    %v101 = vpack.c.bf16 %v76, %v75
    %v102 = vpack.c.bf16 %v78, %v77
    %v103 = vpack.c.bf16 %v80, %v79
    %v104 = vpack.c.bf16 %v82, %v81
    %v105 = vpack.c.bf16 %v84, %v83
    %v106 = vpack.c.bf16 %v86, %v85
    %v107 = vunpack.c.l.bf16 %v99
    %v108 = vunpack.c.h.bf16 %v99
    %v109 = vunpack.c.l.bf16 %v100
    %v110 = vunpack.c.h.bf16 %v100
    %v111 = vunpack.c.l.bf16 %v101
    %v112 = vunpack.c.h.bf16 %v101
    %v113 = vunpack.c.l.bf16 %v102
    %v114 = vunpack.c.h.bf16 %v102
    %v115 = vunpack.c.l.bf16 %v103
    %v116 = vunpack.c.h.bf16 %v103
    %v117 = vunpack.c.l.bf16 %v104
    %v118 = vunpack.c.h.bf16 %v104
    %v119 = vunpack.c.l.bf16 %v105
    %v120 = vunpack.c.h.bf16 %v105
    %v121 = vunpack.c.l.bf16 %v106
    %v122 = vunpack.c.h.bf16 %v106
    %v123 = vsub.f32 %v71, %v107
    %v124 = vsub.f32 %v72, %v108
    %v125 = vsub.f32 %v73, %v109
    %v126 = vsub.f32 %v74, %v110
    %v127 = vsub.f32 %v75, %v111
    %v128 = vsub.f32 %v76, %v112
    %v129 = vsub.f32 %v77, %v113
    %v130 = vsub.f32 %v78, %v114
    %v131 = vsub.f32 %v79, %v115
    %v132 = vsub.f32 %v80, %v116
    %v133 = vsub.f32 %v81, %v117
    %v134 = vsub.f32 %v82, %v118
    %v135 = vsub.f32 %v83, %v119
    %v136 = vsub.f32 %v84, %v120
    %v137 = vsub.f32 %v85, %v121
    %v138 = vsub.f32 %v86, %v122
    %v139 = vpack.c.bf16 %v124, %v123
    %v140 = vpack.c.bf16 %v126, %v125
    %v141 = vpack.c.bf16 %v128, %v127
    %v142 = vpack.c.bf16 %v130, %v129
    %v143 = vpack.c.bf16 %v132, %v131
    %v144 = vpack.c.bf16 %v134, %v133
    %v145 = vpack.c.bf16 %v136, %v135
    %v146 = vpack.c.bf16 %v138, %v137
    %147 = vmatprep.subr.bf16.mxu0 0
    %148 = vmatpush1.bf16.msra.mxu0 %v139
    %149 = vmatprep.subr.bf16.mxu0 0
    %150 = vmatpush1.bf16.msra.mxu0 %v140
    %151 = vmatprep.subr.bf16.mxu0 0
    %152 = vmatpush1.bf16.msra.mxu0 %v141
    %153 = vmatprep.subr.bf16.mxu0 0
    %154 = vmatpush1.bf16.msra.mxu0 %v142
    %155 = vmatprep.subr.bf16.mxu0 0
    %156 = vmatpush1.bf16.msra.mxu0 %v143
    %157 = vmatprep.subr.bf16.mxu0 0
    %158 = vmatpush1.bf16.msra.mxu0 %v144
    %159 = vmatprep.subr.bf16.mxu0 0
    %160 = vmatpush1.bf16.msra.mxu0 %v145
    %161 = vmatprep.subr.bf16.mxu0 0
    %162 = vmatpush1.bf16.msra.mxu0 %v146
    %163 = vmatprep.subr.bf16.mxu0 0
    %164 = vmatpush1.bf16.msra.mxu0 0
    %165 = vmatprep.subr.bf16.mxu0 0
    %166 = vmatpush1.bf16.msra.mxu0 0
    %167 = vmatprep.subr.bf16.mxu0 0
    %168 = vmatpush1.bf16.msra.mxu0 0
    %169 = vmatprep.subr.bf16.mxu0 0
    %170 = vmatpush1.bf16.msra.mxu0 0
    %171 = vmatprep.subr.bf16.mxu0 0
    %172 = vmatpush1.bf16.msra.mxu0 0
    %173 = vmatprep.subr.bf16.mxu0 0
    %174 = vmatpush1.bf16.msra.mxu0 0
    %175 = vmatprep.subr.bf16.mxu0 0
    %176 = vmatpush1.bf16.msra.mxu0 0
    %177 = vmatprep.subr.bf16.mxu0 0
    %178 = vmatpush1.bf16.msra.mxu0 0
    %179 = vmatprep.mubr.bf16.mxu0 0
    %180 = vmatmul.mubr.bf16.gmra.mrb[0].mxu0 %v98
    %v181 = vpop.f32.mrb[0].mxu0
    %v182 = vadd.f32 0.0, %v181
    %v183 = vpop.f32.mrb[0].mxu0
    %v184 = vpop.f32.mrb[0].mxu0
    %v185 = vpop.f32.mrb[0].mxu0
    %186 = vdwg.mxu0
    %187 = vmatprep.subr.bf16.mxu0 0
    %188 = vmatpush1.bf16.msra.mxu0 %v99
    %189 = vmatprep.subr.bf16.mxu0 0
    %190 = vmatpush1.bf16.msra.mxu0 %v100
    %191 = vmatprep.subr.bf16.mxu0 0
    %192 = vmatpush1.bf16.msra.mxu0 %v101
    %193 = vmatprep.subr.bf16.mxu0 0
    %194 = vmatpush1.bf16.msra.mxu0 %v102
    %195 = vmatprep.subr.bf16.mxu0 0
    %196 = vmatpush1.bf16.msra.mxu0 %v103
    %197 = vmatprep.subr.bf16.mxu0 0
    %198 = vmatpush1.bf16.msra.mxu0 %v104
    %199 = vmatprep.subr.bf16.mxu0 0
    %200 = vmatpush1.bf16.msra.mxu0 %v105
    %201 = vmatprep.subr.bf16.mxu0 0
    %202 = vmatpush1.bf16.msra.mxu0 %v106
    %203 = vmatprep.subr.bf16.mxu0 0
    %204 = vmatpush1.bf16.msra.mxu0 0
    %205 = vmatprep.subr.bf16.mxu0 0
    %206 = vmatpush1.bf16.msra.mxu0 0
    %207 = vmatprep.subr.bf16.mxu0 0
    %208 = vmatpush1.bf16.msra.mxu0 0
    %209 = vmatprep.subr.bf16.mxu0 0
    %210 = vmatpush1.bf16.msra.mxu0 0
    %211 = vmatprep.subr.bf16.mxu0 0
    %212 = vmatpush1.bf16.msra.mxu0 0
    %213 = vmatprep.subr.bf16.mxu0 0
    %214 = vmatpush1.bf16.msra.mxu0 0
    %215 = vmatprep.subr.bf16.mxu0 0
    %216 = vmatpush1.bf16.msra.mxu0 0
    %217 = vmatprep.subr.bf16.mxu0 0
    %218 = vmatpush1.bf16.msra.mxu0 0
    %219 = vmatprep.mubr.bf16.mxu0 0
    %220 = vmatmul.mubr.bf16.gmra.mrb[0].mxu0 %v98
    %v221 = vpop.f32.mrb[0].mxu0
    %v222 = vadd.f32 %v182, %v221
    %v223 = vpop.f32.mrb[0].mxu0
    %v224 = vpop.f32.mrb[0].mxu0
    %v225 = vpop.f32.mrb[0].mxu0
    %226 = vdwg.mxu0
    %v227 = vld [vmem:[#allocation2] sm:$0xff]
    %v228 = vadd.f32 %v227, %v222
    %229 = vst [vmem:[#allocation2] sm:$0xff] %v228
    // Predicated region
    $region34: #{center_loss_forward.1} parent=1 // pred_check
      %p230 = pneg %p56
    $region35: #{center_loss_forward.1} parent=1 // pred_check_branch
      %232 = sbr.rel (%p230) target = $region37
    $region36: #{center_loss_forward.1} parent=1 // pred_region
      %v233 = vld [vmem:[#allocation4] sm:$0x1]
      %v234 = vadd.f32 %v71, %v72
      %v235 = vadd.f32 %v234, %v73
      %v236 = vadd.f32 %v235, %v74
      %v237 = vadd.f32 %v236, %v75
      %v238 = vadd.f32 %v237, %v76
      %v239 = vadd.f32 %v238, %v77
      %v240 = vadd.f32 %v239, %v78
      %v241 = vadd.f32 %v240, %v79
      %v242 = vadd.f32 %v241, %v80
      %v243 = vadd.f32 %v242, %v81
      %v244 = vadd.f32 %v243, %v82
      %v245 = vadd.f32 %v244, %v83
      %v246 = vadd.f32 %v245, %v84
      %v247 = vadd.f32 %v246, %v85
      %v248 = vadd.f32 %v247, %v86
      %249 = vadd.xlane.f32.xlu0 %v248
      %v250 = vpop.xlane.xlu0 %249
      %v251 = vrot.slane %v250, 4
      %v252 = vadd.f32 %v250, %v251
      %v253 = vrot.slane %v252, 2
      %v254 = vadd.f32 %v252, %v253
      %v255 = vrot.slane %v254, 1
      %v256 = vadd.f32 %v254, %v255
      %s257 = vtos %v256
      %v258 = vstv %s257
      %v259 = vadd.f32 %v233, %v258
      %vm260 = vcmask 0
      %261 = vst.msk [vmem:[#allocation4] sm:$0x1] %vm260, %v259
      %v262 = vld [vmem:[#allocation5] sm:$0x1]
      %v263 = vmul.f32 %v71, %v71
      %v264 = vmul.f32 %v72, %v72
      %v265 = vmul.f32 %v73, %v73
      %v266 = vmul.f32 %v74, %v74
      %v267 = vmul.f32 %v75, %v75
      %v268 = vmul.f32 %v76, %v76
      %v269 = vmul.f32 %v77, %v77
      %v270 = vmul.f32 %v78, %v78
      %v271 = vmul.f32 %v79, %v79
      %v272 = vmul.f32 %v80, %v80
      %v273 = vmul.f32 %v81, %v81
      %v274 = vmul.f32 %v82, %v82
      %v275 = vmul.f32 %v83, %v83
      %v276 = vmul.f32 %v84, %v84
      %v277 = vmul.f32 %v85, %v85
      %v278 = vmul.f32 %v86, %v86
      %v279 = vadd.f32 %v263, %v264
      %v280 = vadd.f32 %v279, %v265
      %v281 = vadd.f32 %v280, %v266
      %v282 = vadd.f32 %v281, %v267
      %v283 = vadd.f32 %v282, %v268
      %v284 = vadd.f32 %v283, %v269
      %v285 = vadd.f32 %v284, %v270
      %v286 = vadd.f32 %v285, %v271
      %v287 = vadd.f32 %v286, %v272
      %v288 = vadd.f32 %v287, %v273
      %v289 = vadd.f32 %v288, %v274
      %v290 = vadd.f32 %v289, %v275
      %v291 = vadd.f32 %v290, %v276
      %v292 = vadd.f32 %v291, %v277
      %v293 = vadd.f32 %v292, %v278
      %294 = vadd.xlane.f32.xlu0 %v293
      %v295 = vpop.xlane.xlu0 %294
      %v296 = vrot.slane %v295, 4
      %v297 = vadd.f32 %v295, %v296
      %v298 = vrot.slane %v297, 2
      %v299 = vadd.f32 %v297, %v298
      %v300 = vrot.slane %v299, 1
      %v301 = vadd.f32 %v299, %v300
      %s302 = vtos %v301
      %v303 = vstv %s302
      %v304 = vadd.f32 %v262, %v303
      %305 = vst.msk [vmem:[#allocation5] sm:$0x1] %vm260, %v304
    $region37: #{center_loss_forward.1} parent=1 // pred_fallthru
      _
    // Predicated region
    $region38: #{center_loss_forward.1} parent=1 // pred_check
      %p306 = pneg %p57
    $region39: #{center_loss_forward.1} parent=1 // pred_check_branch
      %308 = sbr.rel (%p306) target = $region41
    $region40: #{center_loss_forward.1} parent=1 // pred_region
      %v309 = vld [vmem:[#allocation6] sm:$0xff]
      %v310 = vld [vmem:[#allocation2] sm:$0xff]
      %v311 = vsub.f32 %v309, %v310
      %v312 = vld [vmem:[#allocation3] sm:$0x1]
      %v313 = vmul.f32 %v311, %v311
      %314 = vadd.xlane.f32.xlu0 %v313
      %v315 = vpop.xlane.xlu0 %314
      %v316 = vrot.slane %v315, 4
      %v317 = vadd.f32 %v315, %v316
      %v318 = vrot.slane %v317, 2
      %v319 = vadd.f32 %v317, %v318
      %v320 = vrot.slane %v319, 1
      %v321 = vadd.f32 %v319, %v320
      %s322 = vtos %v321
      %v323 = vstv %s322
      %v324 = vadd.f32 %v312, %v323
      %vm325 = vcmask 0
      %326 = vst.msk [vmem:[#allocation3] sm:$0x1] %vm325, %v324
    $region41: #{center_loss_forward.1} parent=1 // pred_fallthru
      _
    // Predicated region
    $region42: #{center_loss_forward.1} parent=1 // pred_check
      _
    $region43: #{center_loss_forward.1} parent=1 // pred_check_branch
      %328 = sbr.rel (%p58) target = $region45
    $region44: #{center_loss_forward.1} parent=1 // pred_region
      %v329 = vld [vmem:[#allocation3] sm:$0x1]
      %v330 = vrcp.pop 256.0
      %v331 = vmul.f32 %v329, %v330
      %vm332 = vcmask 0
      %333 = vst.msk [vmem:[#allocation12] sm:$0x1] %vm332, %v331
      %v334 = vld [vmem:[#allocation4] sm:$0x1]
      %v335 = vrcp.pop 512.0
      %v336 = vmul.f32 %v334, %v335
      %v337 = vld [vmem:[#allocation5] sm:$0x1]
      %v338 = vmul.f32 %v336, 512.0
      %v339 = vmul.f32 %v338, %v336
      %v340 = vsub.f32 %v337, %v339
      %v341 = vrcp.pop 511.0
      %v342 = vmul.f32 %v340, %v341
      %v343 = vmax.f32 %v342, 0.0
      %344 = vst.msk [vmem:[#allocation13] sm:$0x1] %vm332, %v343
    $region45: #{center_loss_forward.1} parent=1 // pred_fallthru
      _
    // Predicated region
    $region46: #{center_loss_forward.1} parent=1 // pred_check
      _
    $region47: #{center_loss_forward.1} parent=1 // pred_check_branch
      %346 = sbr.rel (0) target = $region49
    $region48: #{center_loss_forward.1} parent=1 // pred_region
      %s348 = ssub.s32 16, 16
      %349 = vsyncadd [#allocation8], %s348
      %s351 = sshll.u32 [#allocation12], 4
      %s352 = int_to_ptr.vmem [resolvable:$true] %s351
      %354 = dma.vmem_to_hbm [thread:$0]  %s352, 16, %s3, [#allocation8]
    $region49: #{center_loss_forward.1} parent=1 // pred_fallthru
      _
    // Predicated region
    $region50: #{center_loss_forward.1} parent=1 // pred_check
      _
    $region51: #{center_loss_forward.1} parent=1 // pred_check_branch
      %356 = sbr.rel (0) target = $region53
    $region52: #{center_loss_forward.1} parent=1 // pred_region
      %s358 = ssub.s32 16, 16
      %359 = vsyncadd [#allocation14], %s358
      %s361 = sshll.u32 [#allocation13], 4
      %s362 = int_to_ptr.vmem [resolvable:$true] %s361
      %364 = dma.vmem_to_hbm [thread:$0]  %s362, 16, %s4, [#allocation14]
    $region53: #{center_loss_forward.1} parent=1 // pred_fallthru
      _
    // Predicated region
    $region54: #{center_loss_forward.1} parent=1 // pred_check
      _
    $region55: #{center_loss_forward.1} parent=1 // pred_check_branch
      %366 = sbr.rel (0) target = $region57
    $region56: #{center_loss_forward.1} parent=1 // pred_region
      %367 = dma.done [#allocation8], 16
    $region57: #{center_loss_forward.1} parent=1 // pred_fallthru
      _
    // Predicated region
    $region58: #{center_loss_forward.1} parent=1 // pred_check
      _
    $region59: #{center_loss_forward.1} parent=1 // pred_check_branch
      %369 = sbr.rel (0) target = $region61
    $region60: #{center_loss_forward.1} parent=1 // pred_region
      %370 = dma.done [#allocation14], 16
    $region61: #{center_loss_forward.1} parent=1 // pred_fallthru
      _
    %371 = vsyncpa [#allocation7], 1
    %372 = vsyncpa [#allocation10], 1
    %373 = vsyncpa [#allocation8], 1
    %374 = vsyncpa [#allocation14], 1

</llo_original>
